<compile_context>
chip_gen: v6e
topology: v6e:2x2x1
jax: 0.10.0
libtpu: 0.0.40
codegen_flags: <defaults>
</compile_context>

<pallas_src>
import math
import jax
import jax.numpy as jnp
from jax.experimental import pallas as pl
from jax.experimental.pallas import tpu as pltpu


def _round_up(x, m):
    return ((x + m - 1) // m) * m


# ----------------------------------------------------------------------------
# Kernel: ReLU(ReLU(x @ W1 + b1) @ W2 + b2) on one batch tile.
# Weights/biases have constant index_maps -> DMA'd once, VMEM-resident for the
# whole launch while batch tiles stream through.
# ----------------------------------------------------------------------------
def _make_fused_kernel(precision=None):
    def kernel(x_ref, w1_ref, b1_ref, w2_ref, b2_ref, o_ref):
        # Layer 1: (TB, D_pad) @ (D_pad, H2_pad) on the MXU, f32 accumulation.
        h = jnp.dot(x_ref[...], w1_ref[...],
                    preferred_element_type=jnp.float32, precision=precision)
        h = jnp.maximum(h + b1_ref[...].astype(jnp.float32), 0.0)  # f32 epilogue

        # Layer 2: (TB, H2_pad) @ (H2_pad, HO_pad), f32 accumulation.
        w2 = w2_ref[...]
        o = jnp.dot(h.astype(w2.dtype), w2,
                    preferred_element_type=jnp.float32, precision=precision)
        o = jnp.maximum(o + b2_ref[...].astype(jnp.float32), 0.0)
        o_ref[...] = o.astype(o_ref.dtype)

    return kernel


# ----------------------------------------------------------------------------
# Parameter init / one-time packing (block-diagonal fusion of all views).
# ----------------------------------------------------------------------------
def init_encoder_params(key, input_dim, hidden_dim):
    """Per-view params, PyTorch-style init U(-1/sqrt(fan_in), 1/sqrt(fan_in)).

    Weights stored as (in, out) so the kernel computes x @ W + b (== x @ W.T + b
    with PyTorch's (out, in) layout)."""
    k1, k2, k3, k4 = jax.random.split(key, 4)
    h2 = hidden_dim * 2
    bound1 = 1.0 / math.sqrt(input_dim)
    bound2 = 1.0 / math.sqrt(h2)
    w1 = jax.random.uniform(k1, (input_dim, h2), jnp.float32, -bound1, bound1)
    b1 = jax.random.uniform(k2, (1, h2), jnp.float32, -bound1, bound1)
    w2 = jax.random.uniform(k3, (h2, hidden_dim), jnp.float32, -bound2, bound2)
    b2 = jax.random.uniform(k4, (1, hidden_dim), jnp.float32, -bound2, bound2)
    return w1, b1, w2, b2


def _block_diag(mats):
    rows = sum(m.shape[0] for m in mats)
    cols = sum(m.shape[1] for m in mats)
    out = jnp.zeros((rows, cols), mats[0].dtype)
    r = c = 0
    for m in mats:
        out = out.at[r:r + m.shape[0], c:c + m.shape[1]].set(m)
        r += m.shape[0]
        c += m.shape[1]
    return out


def pack_params(params, input_dims, hidden_dim, dtype=jnp.float32):
    """One-time: fuse V per-view MLPs into block-diagonal weights + concatenated
    biases, zero-padded to lane-dense (multiples of 128) shapes, stored in `dtype`
    in HBM (bf16 halves weight DMA traffic on the bandwidth-bound kernel)."""
    V = len(params)
    sum_d = sum(input_dims)
    h2 = 2 * hidden_dim * V
    ho = hidden_dim * V
    d_pad = _round_up(sum_d, 128)
    h2_pad = _round_up(h2, 128)
    ho_pad = _round_up(ho, 128)

    w1 = _block_diag([p[0] for p in params])                 # (sum_d, V*2H)
    b1 = jnp.concatenate([p[1] for p in params], axis=1)     # (1, V*2H)
    w2 = _block_diag([p[2] for p in params])                 # (V*2H, V*H)
    b2 = jnp.concatenate([p[3] for p in params], axis=1)     # (1, V*H)

    w1 = jnp.pad(w1, ((0, d_pad - sum_d), (0, h2_pad - h2))).astype(dtype)
    b1 = jnp.pad(b1, ((0, 0), (0, h2_pad - h2))).astype(dtype)
    w2 = jnp.pad(w2, ((0, h2_pad - h2), (0, ho_pad - ho))).astype(dtype)
    b2 = jnp.pad(b2, ((0, 0), (0, ho_pad - ho))).astype(dtype)
    return w1, b1, w2, b2


# ----------------------------------------------------------------------------
# Forward pass.
# ----------------------------------------------------------------------------
def multi_view_encoder_packed(x_list, packed, *, compute_dtype=jnp.float32,
                              precision=None):
    """Returns the packed (b_pad, ho_pad) output slab.
    Columns [v*H, (v+1)*H) of the first B rows are view v's encoding.
    NOTE: rows >= B and columns >= V*H are padding (rows >= B are nonzero junk)."""
    w1, b1, w2, b2 = packed
    d_pad, h2_pad = w1.shape
    ho_pad = w2.shape[1]
    B = x_list[0].shape[0]
    sum_d = sum(x.shape[1] for x in x_list)

    # One concatenate + one pad (single HBM pass) instead of V dynamic-update-slices.
    x_cat = jnp.concatenate(x_list, axis=1).astype(compute_dtype)

    # Batch tile: 512 rows for large batches (sweep 512/1024); sublane-multiple
    # round-up for small ones.  Both f32 and bf16 tiles stay ~1 MiB double-buffered.
    tile_mult = 8 * (4 // jnp.dtype(compute_dtype).itemsize)   # 8 for f32, 16 for bf16
    tb = 512 if B >= 512 else _round_up(B, tile_mult)
    b_pad = _round_up(B, tb)
    x_pad = jnp.pad(x_cat, ((0, b_pad - B), (0, d_pad - sum_d)))

    grid = (b_pad // tb,)

    itemsize = jnp.dtype(compute_dtype).itemsize
    flops = 2 * b_pad * (d_pad * h2_pad + h2_pad * ho_pad)
    bytes_accessed = (x_pad.size + w1.size + b1.size + w2.size + b2.size
                      + b_pad * ho_pad) * itemsize

    out = pl.pallas_call(
        _make_fused_kernel(precision),
        out_shape=jax.ShapeDtypeStruct((b_pad, ho_pad), compute_dtype),
        grid=grid,
        in_specs=[
            # x: streams with the batch-tile axis.
            pl.BlockSpec((tb, d_pad), lambda i: (i, 0)),
            # Weights/biases: constant index_map -> one DMA for the whole launch,
            # VMEM-resident across all batch tiles.
            pl.BlockSpec((d_pad, h2_pad), lambda i: (0, 0)),
            pl.BlockSpec((1, h2_pad), lambda i: (0, 0)),
            pl.BlockSpec((h2_pad, ho_pad), lambda i: (0, 0)),
            pl.BlockSpec((1, ho_pad), lambda i: (0, 0)),
        ],
        out_specs=pl.BlockSpec((tb, ho_pad), lambda i: (i, 0)),
        compiler_params=pltpu.CompilerParams(
            # No cross-step accumulation; the (long) batch axis is the
            # megacore-split axis on v7x.
            dimension_semantics=("parallel",),
        ),
        cost_estimate=pl.CostEstimate(
            flops=flops, transcendentals=0, bytes_accessed=bytes_accessed),
    )(x_pad, w1, b1, w2, b2)

    return out


def multi_view_encoder(x_list, packed, hidden_dim, *, compute_dtype=jnp.float32,
                       precision=None):
    """Equivalent of MultiViewEncoder.forward: list of (B, D_v) -> list of (B, H).
    Per-view outputs are contiguous column slices of the packed slab."""
    out = multi_view_encoder_packed(x_list, packed, compute_dtype=compute_dtype,
                                    precision=precision)
    B = x_list[0].shape[0]
    return [out[:B, v * hidden_dim:(v + 1) * hidden_dim] for v in range(len(x_list))]


# ----------------------------------------------------------------------------
# Pure-JAX reference (matches the PyTorch module).
# ----------------------------------------------------------------------------
def _reference(X, params):
    outs = []
    for x, (w1, b1, w2, b2) in zip(X, params):
        h = jnp.maximum(x @ w1 + b1, 0.0)
        outs.append(jnp.maximum(h @ w2 + b2, 0.0))
    return outs


if __name__ == "__main__":
    key = jax.random.PRNGKey(0)
    input_dims = [16, 32, 24]
    hidden_dim = 32
    batch = 8

    keys = jax.random.split(key, 2 * len(input_dims))
    X = [jax.random.normal(keys[i], (batch, d), jnp.float32)
         for i, d in enumerate(input_dims)]
    params = [init_encoder_params(keys[len(input_dims) + i], d, hidden_dim)
              for i, d in enumerate(input_dims)]

    refs = _reference(X, params)

    # ---- f32 storage / f32 MXU operands (default reduced-precision passes) ----
    packed_f32 = pack_params(params, input_dims, hidden_dim, dtype=jnp.float32)
    outs = multi_view_encoder(X, packed_f32, hidden_dim, compute_dtype=jnp.float32)
    outs = [jax.block_until_ready(o) for o in outs]
    for o, r in zip(outs, refs):
        assert o.shape == (batch, hidden_dim)
        assert jnp.allclose(o, r, atol=1e-5, rtol=1e-5)

    # ---- bf16 HBM storage + bf16 MXU operands, f32 accumulation / epilogue ----
    packed_bf16 = pack_params(params, input_dims, hidden_dim, dtype=jnp.bfloat16)
    outs_bf16 = multi_view_encoder(X, packed_bf16, hidden_dim,
                                   compute_dtype=jnp.bfloat16)
    outs_bf16 = [jax.block_until_ready(o) for o in outs_bf16]
    for o, r in zip(outs_bf16, refs):
        assert o.shape == (batch, hidden_dim)
        assert jnp.allclose(o.astype(jnp.float32), r, atol=5e-2, rtol=5e-2)

    print("KERNEL_OK")
</pallas_src>

<mosaic_0001>
module attributes {stable_mosaic.version = 11 : i64} {
  func.func @kernel(%arg0: i32, %arg1: memref<8x128xf32, #tpu.memory_space<vmem>>, %arg2: memref<128x256xf32, #tpu.memory_space<vmem>>, %arg3: memref<1x256xf32, #tpu.memory_space<vmem>>, %arg4: memref<256x128xf32, #tpu.memory_space<vmem>>, %arg5: memref<1x128xf32, #tpu.memory_space<vmem>>, %arg6: memref<8x128xf32, #tpu.memory_space<vmem>>) attributes {dimension_semantics = [#tpu.dimension_semantics<parallel>], iteration_bounds = array<i64: 1>, scalar_prefetch = 0 : i64, scratch_operands = 0 : i64, tpu.core_type = #tpu.core_type<tc>, window_params = [{transform_indices = @transform_0, window_bounds = array<i64: 8, 128>}, {pipeline_mode = #tpu.pipeline_mode<synchronous>, transform_indices = @transform_1, window_bounds = array<i64: 128, 256>}, {pipeline_mode = #tpu.pipeline_mode<synchronous>, transform_indices = @transform_2, window_bounds = array<i64: 1, 256>}, {pipeline_mode = #tpu.pipeline_mode<synchronous>, transform_indices = @transform_3, window_bounds = array<i64: 256, 128>}, {pipeline_mode = #tpu.pipeline_mode<synchronous>, transform_indices = @transform_4, window_bounds = array<i64: 1, 128>}, {transform_indices = @transform_5, window_bounds = array<i64: 8, 128>}]} {
    %c0 = arith.constant 0 : index
    %c0_0 = arith.constant 0 : index
    %0 = vector.load %arg1[%c0, %c0_0] : memref<8x128xf32, #tpu.memory_space<vmem>>, vector<8x128xf32>
    %c0_1 = arith.constant 0 : index
    %c0_2 = arith.constant 0 : index
    %1 = vector.load %arg2[%c0_1, %c0_2] : memref<128x256xf32, #tpu.memory_space<vmem>>, vector<128x256xf32>
    %cst = arith.constant dense<0.000000e+00> : vector<8x256xf32>
    %2 = tpu.matmul %0, %1, %cst {dimension_numbers = #tpu.dot_dimension_numbers<[1], [0], [0], [1], [0, 0, 1, 1], [], []>} : vector<8x128xf32>, vector<128x256xf32>, vector<8x256xf32> -> vector<8x256xf32>
    %c0_3 = arith.constant 0 : index
    %c0_4 = arith.constant 0 : index
    %3 = vector.load %arg3[%c0_3, %c0_4] : memref<1x256xf32, #tpu.memory_space<vmem>>, vector<1x256xf32>
    %4 = vector.broadcast %3 : vector<1x256xf32> to vector<8x256xf32>
    %5 = arith.addf %2, %4 : vector<8x256xf32>
    %cst_5 = arith.constant 0.000000e+00 : f32
    %6 = vector.broadcast %cst_5 : f32 to vector<8x256xf32>
    %7 = arith.maximumf %5, %6 : vector<8x256xf32>
    %c0_6 = arith.constant 0 : index
    %c0_7 = arith.constant 0 : index
    %8 = vector.load %arg4[%c0_6, %c0_7] : memref<256x128xf32, #tpu.memory_space<vmem>>, vector<256x128xf32>
    %cst_8 = arith.constant dense<0.000000e+00> : vector<8x128xf32>
    %9 = tpu.matmul %7, %8, %cst_8 {dimension_numbers = #tpu.dot_dimension_numbers<[1], [0], [0], [1], [0, 0, 1, 1], [], []>} : vector<8x256xf32>, vector<256x128xf32>, vector<8x128xf32> -> vector<8x128xf32>
    %c0_9 = arith.constant 0 : index
    %c0_10 = arith.constant 0 : index
    %10 = vector.load %arg5[%c0_9, %c0_10] : memref<1x128xf32, #tpu.memory_space<vmem>>, vector<1x128xf32>
    %11 = vector.broadcast %10 : vector<1x128xf32> to vector<8x128xf32>
    %12 = arith.addf %9, %11 : vector<8x128xf32>
    %cst_11 = arith.constant 0.000000e+00 : f32
    %13 = vector.broadcast %cst_11 : f32 to vector<8x128xf32>
    %14 = arith.maximumf %12, %13 : vector<8x128xf32>
    %c0_12 = arith.constant 0 : index
    %c0_13 = arith.constant 0 : index
    %15 = vector.load %arg6[%c0_12, %c0_13] : memref<8x128xf32, #tpu.memory_space<vmem>>, vector<8x128xf32>
    tpu.vector_store %arg6[%c0_12, %c0_13], %14 {strides = array<i32>} : memref<8x128xf32, #tpu.memory_space<vmem>>, vector<8x128xf32>,
    return
  }
  func.func @transform_0(%arg0: i32) -> (i32, i32) {
    %c0_i32 = arith.constant 0 : i32
    %c0_i32_0 = arith.constant 0 : i32
    return %arg0, %c0_i32 : i32, i32
  }
  func.func @transform_1(%arg0: i32) -> (i32, i32) {
    %c0_i32 = arith.constant 0 : i32
    %c0_i32_0 = arith.constant 0 : i32
    %c0_i32_1 = arith.constant 0 : i32
    return %c0_i32, %c0_i32_0 : i32, i32
  }
  func.func @transform_2(%arg0: i32) -> (i32, i32) {
    %c0_i32 = arith.constant 0 : i32
    %c0_i32_0 = arith.constant 0 : i32
    %c0_i32_1 = arith.constant 0 : i32
    return %c0_i32, %c0_i32_0 : i32, i32
  }
  func.func @transform_3(%arg0: i32) -> (i32, i32) {
    %c0_i32 = arith.constant 0 : i32
    %c0_i32_0 = arith.constant 0 : i32
    %c0_i32_1 = arith.constant 0 : i32
    return %c0_i32, %c0_i32_0 : i32, i32
  }
  func.func @transform_4(%arg0: i32) -> (i32, i32) {
    %c0_i32 = arith.constant 0 : i32
    %c0_i32_0 = arith.constant 0 : i32
    %c0_i32_1 = arith.constant 0 : i32
    return %c0_i32, %c0_i32_0 : i32, i32
  }
  func.func @transform_5(%arg0: i32) -> (i32, i32) {
    %c0_i32 = arith.constant 0 : i32
    %c0_i32_0 = arith.constant 0 : i32
    return %arg0, %c0_i32 : i32, i32
  }
}

</mosaic_0001>

<llo_original>
// kernel: tpu_custom_call.1
$region0: #{tpu_custom_call.1}
  #allocation0 [shape = 'u32[]', space=smem, size = 0x4, offset = 0x4, fixed_abs, tag = 'smem constant byte address 0x4 - core index']
  #allocation1 [shape = 'u32[144,128]{1,0:T(1,128)}', space=vmem, size = 0x12000, scoped, tag = 'internal scratch']
  %s0 = inlined_call_operand.hbm [shape: f32[8,128], index: 0, kind: input, shape index: {}]
  %s1 = inlined_call_operand.hbm [shape: f32[128,256], index: 1, kind: input, shape index: {}]
  %s2 = inlined_call_operand.vmem [shape: f32[1,256], index: 2, kind: input, shape index: {}]
  %s3 = inlined_call_operand.hbm [shape: f32[256,128], index: 3, kind: input, shape index: {}]
  %s4 = inlined_call_operand.vmem [shape: f32[1,128], index: 4, kind: input, shape index: {}]
  %s5 = inlined_call_operand.hbm [shape: f32[8,128], index: 5, kind: output, shape index: {}]
  %s6 = sld [smem:[#allocation0]]
  $region42: #{tpu_custom_call.1} parent=0
    _
  %s8 = ssub.s32 1, %s6
  %s9 = scalar_select 0, %s8, %s6
  $region1: #{tpu_custom_call.1} parent=0
    #allocation2 [shape = 'u8[4096]{0}', space=vmem, size = 0x1000, scoped, tag = 'input window, operand 0, single buffered']
    #allocation3 [shape = 's32[1]{0}', space=sflag, size = 0x4, scoped, tag = 'scoped memory for tpu_custom_call.1']
    #allocation4 [shape = 's32[1]{0}', space=sflag, size = 0x4, scoped, tag = 'scoped memory for tpu_custom_call.1']
    #allocation5 [shape = 'u8[131072]{0}', space=vmem, size = 0x20000, scoped, tag = 'input window, operand 1, single buffered']
    #allocation6 [shape = 's32[1]{0}', space=sflag, size = 0x4, scoped, tag = 'scoped memory for tpu_custom_call.1']
    #allocation7 [shape = 'u8[131072]{0}', space=vmem, size = 0x20000, scoped, tag = 'input window, operand 3, single buffered']
    #allocation8 [shape = 'u8[4096]{0}', space=vmem, size = 0x1000, scoped, tag = 'output window, operand 0, single buffered']
    %10 = vsyncpa [#allocation3], 0
    %11 = vsyncpa [#allocation6], 0
    %12 = vsyncpa [#allocation4], 0
    // Predicated region
    $region2: #{tpu_custom_call.1} parent=1 // pred_check
      _
    $region3: #{tpu_custom_call.1} parent=1 // pred_check_branch
      %14 = sbr.rel (0) target = $region5
    $region4: #{tpu_custom_call.1} parent=1 // pred_region
      %s16 = ssub.s32 128, 128
      %17 = vsyncadd [#allocation3], %s16
      %s19 = sshll.u32 [#allocation2], 4
      %s20 = int_to_ptr.vmem [resolvable:$true] %s19
      %22 = dma.hbm_to_vmem [thread:$0]  %s0, 128, %s20, [#allocation3]
    $region5: #{tpu_custom_call.1} parent=1 // pred_fallthru
      _
    // Predicated region
    $region6: #{tpu_custom_call.1} parent=1 // pred_check
      _
    $region7: #{tpu_custom_call.1} parent=1 // pred_check_branch
      %24 = sbr.rel (0) target = $region9
    $region8: #{tpu_custom_call.1} parent=1 // pred_region
      %s26 = ssub.s32 4096, 4096
      %27 = vsyncadd [#allocation6], %s26
      %s28 = sshll.u32 [#allocation5], 4
      %s29 = int_to_ptr.vmem [resolvable:$true] %s28
      %34 = dma.hbm_to_vmem [thread:$0]  %s1, 4096, %s29, [#allocation6], 256, 256, 16
    $region9: #{tpu_custom_call.1} parent=1 // pred_fallthru
      _
    // Predicated region
    $region10: #{tpu_custom_call.1} parent=1 // pred_check
      _
    $region11: #{tpu_custom_call.1} parent=1 // pred_check_branch
      %36 = sbr.rel (0) target = $region13
    $region12: #{tpu_custom_call.1} parent=1 // pred_region
      _
    $region13: #{tpu_custom_call.1} parent=1 // pred_fallthru
      _
    // Predicated region
    $region14: #{tpu_custom_call.1} parent=1 // pred_check
      _
    $region15: #{tpu_custom_call.1} parent=1 // pred_check_branch
      %38 = sbr.rel (0) target = $region17
    $region16: #{tpu_custom_call.1} parent=1 // pred_region
      %s40 = ssub.s32 4096, 4096
      %41 = vsyncadd [#allocation6], %s40
      %s42 = sshll.u32 [#allocation7], 4
      %s43 = int_to_ptr.vmem [resolvable:$true] %s42
      %48 = dma.hbm_to_vmem [thread:$0]  %s3, 4096, %s43, [#allocation6], 128, 128, 8
    $region17: #{tpu_custom_call.1} parent=1 // pred_fallthru
      _
    // Predicated region
    $region18: #{tpu_custom_call.1} parent=1 // pred_check
      _
    $region19: #{tpu_custom_call.1} parent=1 // pred_check_branch
      %50 = sbr.rel (0) target = $region21
    $region20: #{tpu_custom_call.1} parent=1 // pred_region
      _
    $region21: #{tpu_custom_call.1} parent=1 // pred_fallthru
      _
    // Predicated region
    $region22: #{tpu_custom_call.1} parent=1 // pred_check
      _
    $region23: #{tpu_custom_call.1} parent=1 // pred_check_branch
      %52 = sbr.rel (0) target = $region25
    $region24: #{tpu_custom_call.1} parent=1 // pred_region
      %53 = dma.done [#allocation3], 128
    $region25: #{tpu_custom_call.1} parent=1 // pred_fallthru
      _
    // Predicated region
    $region26: #{tpu_custom_call.1} parent=1 // pred_check
      _
    $region27: #{tpu_custom_call.1} parent=1 // pred_check_branch
      %55 = sbr.rel (0) target = $region29
    $region28: #{tpu_custom_call.1} parent=1 // pred_region
      %56 = dma.done [#allocation6], 4096
    $region29: #{tpu_custom_call.1} parent=1 // pred_fallthru
      _
    // Predicated region
    $region30: #{tpu_custom_call.1} parent=1 // pred_check
      _
    $region31: #{tpu_custom_call.1} parent=1 // pred_check_branch
      %58 = sbr.rel (0) target = $region33
    $region32: #{tpu_custom_call.1} parent=1 // pred_region
      %59 = dma.done [#allocation6], 4096
    $region33: #{tpu_custom_call.1} parent=1 // pred_fallthru
      _
    %v60 = vld [vmem:[#allocation2] sm:$0xff]
    %v61 = vld [vmem:[#allocation5] sm:$0xff]
    %v62 = vld [vmem:[#allocation5 + $0x8] sm:$0xff]
    %v63 = vld [vmem:[#allocation5 + $0x10] sm:$0xff]
    %v64 = vld [vmem:[#allocation5 + $0x18] sm:$0xff]
    %v65 = vld [vmem:[#allocation5 + $0x20] sm:$0xff]
    %v66 = vld [vmem:[#allocation5 + $0x28] sm:$0xff]
    %v67 = vld [vmem:[#allocation5 + $0x30] sm:$0xff]
    %v68 = vld [vmem:[#allocation5 + $0x38] sm:$0xff]
    %v69 = vld [vmem:[#allocation5 + $0x40] sm:$0xff]
    %v70 = vld [vmem:[#allocation5 + $0x48] sm:$0xff]
    %v71 = vld [vmem:[#allocation5 + $0x50] sm:$0xff]
    %v72 = vld [vmem:[#allocation5 + $0x58] sm:$0xff]
    %v73 = vld [vmem:[#allocation5 + $0x60] sm:$0xff]
    %v74 = vld [vmem:[#allocation5 + $0x68] sm:$0xff]
    %v75 = vld [vmem:[#allocation5 + $0x70] sm:$0xff]
    %v76 = vld [vmem:[#allocation5 + $0x78] sm:$0xff]
    %v77 = vld [vmem:[#allocation5 + $0x80] sm:$0xff]
    %v78 = vld [vmem:[#allocation5 + $0x88] sm:$0xff]
    %v79 = vld [vmem:[#allocation5 + $0x90] sm:$0xff]
    %v80 = vld [vmem:[#allocation5 + $0x98] sm:$0xff]
    %v81 = vld [vmem:[#allocation5 + $0xa0] sm:$0xff]
    %v82 = vld [vmem:[#allocation5 + $0xa8] sm:$0xff]
    %v83 = vld [vmem:[#allocation5 + $0xb0] sm:$0xff]
    %v84 = vld [vmem:[#allocation5 + $0xb8] sm:$0xff]
    %v85 = vld [vmem:[#allocation5 + $0xc0] sm:$0xff]
    %v86 = vld [vmem:[#allocation5 + $0xc8] sm:$0xff]
    %v87 = vld [vmem:[#allocation5 + $0xd0] sm:$0xff]
    %v88 = vld [vmem:[#allocation5 + $0xd8] sm:$0xff]
    %v89 = vld [vmem:[#allocation5 + $0xe0] sm:$0xff]
    %v90 = vld [vmem:[#allocation5 + $0xe8] sm:$0xff]
    %v91 = vld [vmem:[#allocation5 + $0xf0] sm:$0xff]
    %v92 = vld [vmem:[#allocation5 + $0xf8] sm:$0xff]
    %v93 = vld [vmem:[%s2] sm:$0x3]
    %v95 = vlaneseq
    %v96 = vshrl.u32 %v95, 7
    %v97 = vsub.s32 0, %v96
    %v98 = vrot.slane %v93, %v97
    %v99 = vlaneseq
    %v100 = vshrl.u32 %v99, 7
    %v101 = vsub.s32 1, %v100
    %v102 = vrot.slane %v93, %v101
    %105 = vmatprep.subr.mxu0 %v92
    %106 = vmatpush1.msra.mxu0 %v91
    %107 = vmatprep.subr.mxu0 %v90
    %108 = vmatpush1.msra.mxu0 %v89
    %109 = vmatprep.subr.mxu0 %v88
    %110 = vmatpush1.msra.mxu0 %v87
    %111 = vmatprep.subr.mxu0 %v86
    %112 = vmatpush1.msra.mxu0 %v85
    %113 = vmatprep.subr.mxu0 %v84
    %114 = vmatpush1.msra.mxu0 %v83
    %115 = vmatprep.subr.mxu0 %v82
    %116 = vmatpush1.msra.mxu0 %v81
    %117 = vmatprep.subr.mxu0 %v80
    %118 = vmatpush1.msra.mxu0 %v79
    %119 = vmatprep.subr.mxu0 %v78
    %120 = vmatpush1.msra.mxu0 %v77
    %121 = vmatprep.subr.mxu0 %v76
    %122 = vmatpush1.msra.mxu0 %v75
    %123 = vmatprep.subr.mxu0 %v74
    %124 = vmatpush1.msra.mxu0 %v73
    %125 = vmatprep.subr.mxu0 %v72
    %126 = vmatpush1.msra.mxu0 %v71
    %127 = vmatprep.subr.mxu0 %v70
    %128 = vmatpush1.msra.mxu0 %v69
    %129 = vmatprep.subr.mxu0 %v68
    %130 = vmatpush1.msra.mxu0 %v67
    %131 = vmatprep.subr.mxu0 %v66
    %132 = vmatpush1.msra.mxu0 %v65
    %133 = vmatprep.subr.mxu0 %v64
    %134 = vmatpush1.msra.mxu0 %v63
    %135 = vmatprep.subr.mxu0 %v62
    %136 = vmatpush1.msra.mxu0 %v61
    %137 = vmatprep.subr.mxu0 0.0
    %138 = vmatpush2.msra.mxu0 0.0
    %139 = vmatprep.subr.mxu0 0.0
    %140 = vmatpush2.msra.mxu0 0.0
    %141 = vmatprep.subr.mxu0 0.0
    %142 = vmatpush2.msra.mxu0 0.0
    %143 = vmatprep.subr.mxu0 0.0
    %144 = vmatpush2.msra.mxu0 0.0
    %145 = vmatprep.subr.mxu0 0.0
    %146 = vmatpush2.msra.mxu0 0.0
    %147 = vmatprep.subr.mxu0 0.0
    %148 = vmatpush2.msra.mxu0 0.0
    %149 = vmatprep.subr.mxu0 0.0
    %150 = vmatpush2.msra.mxu0 0.0
    %151 = vmatprep.subr.mxu0 0.0
    %152 = vmatpush2.msra.mxu0 0.0
    %153 = vmatprep.subr.mxu0 0.0
    %154 = vmatpush2.msra.mxu0 0.0
    %155 = vmatprep.subr.mxu0 0.0
    %156 = vmatpush2.msra.mxu0 0.0
    %157 = vmatprep.subr.mxu0 0.0
    %158 = vmatpush2.msra.mxu0 0.0
    %159 = vmatprep.subr.mxu0 0.0
    %160 = vmatpush2.msra.mxu0 0.0
    %161 = vmatprep.subr.mxu0 0.0
    %162 = vmatpush2.msra.mxu0 0.0
    %163 = vmatprep.subr.mxu0 0.0
    %164 = vmatpush2.msra.mxu0 0.0
    %165 = vmatprep.subr.mxu0 0.0
    %166 = vmatpush2.msra.mxu0 0.0
    %167 = vmatprep.subr.mxu0 0.0
    %168 = vmatpush2.msra.mxu0 0.0
    %169 = vmatprep.mubr.f32.mxu0 0.0
    %170 = vmatmul.mubr.f32.gmra.mxu0 %v60
    %v171 = vpop.f32.mrf.mxu0
    %v172 = vadd.f32 %v98, %v171
    %v173 = vpop.f32.mrf.mxu0
    %v174 = vadd.f32 %v102, %v173
    %175 = vdwg.mxu0
    %v176 = vmax.f32 %v172, 0.0
    %v177 = vmax.f32 %v174, 0.0
    %v178 = vld [vmem:[#allocation7] sm:$0xff]
    %v179 = vld [vmem:[#allocation7 + $0x8] sm:$0xff]
    %v180 = vld [vmem:[#allocation7 + $0x10] sm:$0xff]
    %v181 = vld [vmem:[#allocation7 + $0x18] sm:$0xff]
    %v182 = vld [vmem:[#allocation7 + $0x20] sm:$0xff]
    %v183 = vld [vmem:[#allocation7 + $0x28] sm:$0xff]
    %v184 = vld [vmem:[#allocation7 + $0x30] sm:$0xff]
    %v185 = vld [vmem:[#allocation7 + $0x38] sm:$0xff]
    %v186 = vld [vmem:[#allocation7 + $0x40] sm:$0xff]
    %v187 = vld [vmem:[#allocation7 + $0x48] sm:$0xff]
    %v188 = vld [vmem:[#allocation7 + $0x50] sm:$0xff]
    %v189 = vld [vmem:[#allocation7 + $0x58] sm:$0xff]
    %v190 = vld [vmem:[#allocation7 + $0x60] sm:$0xff]
    %v191 = vld [vmem:[#allocation7 + $0x68] sm:$0xff]
    %v192 = vld [vmem:[#allocation7 + $0x70] sm:$0xff]
    %v193 = vld [vmem:[#allocation7 + $0x78] sm:$0xff]
    %v194 = vld [vmem:[#allocation7 + $0x80] sm:$0xff]
    %v195 = vld [vmem:[#allocation7 + $0x88] sm:$0xff]
    %v196 = vld [vmem:[#allocation7 + $0x90] sm:$0xff]
    %v197 = vld [vmem:[#allocation7 + $0x98] sm:$0xff]
    %v198 = vld [vmem:[#allocation7 + $0xa0] sm:$0xff]
    %v199 = vld [vmem:[#allocation7 + $0xa8] sm:$0xff]
    %v200 = vld [vmem:[#allocation7 + $0xb0] sm:$0xff]
    %v201 = vld [vmem:[#allocation7 + $0xb8] sm:$0xff]
    %v202 = vld [vmem:[#allocation7 + $0xc0] sm:$0xff]
    %v203 = vld [vmem:[#allocation7 + $0xc8] sm:$0xff]
    %v204 = vld [vmem:[#allocation7 + $0xd0] sm:$0xff]
    %v205 = vld [vmem:[#allocation7 + $0xd8] sm:$0xff]
    %v206 = vld [vmem:[#allocation7 + $0xe0] sm:$0xff]
    %v207 = vld [vmem:[#allocation7 + $0xe8] sm:$0xff]
    %v208 = vld [vmem:[#allocation7 + $0xf0] sm:$0xff]
    %v209 = vld [vmem:[#allocation7 + $0xf8] sm:$0xff]
    %v210 = vld [vmem:[%s4] sm:$0x1]
    %v212 = vlaneseq
    %v213 = vshrl.u32 %v212, 7
    %v214 = vsub.s32 0, %v213
    %v215 = vrot.slane %v210, %v214
    %217 = vmatprep.subr.mxu0 0.0
    %218 = vmatpush1.msra.mxu0 %v193
    %219 = vmatprep.subr.mxu0 0.0
    %220 = vmatpush1.msra.mxu0 %v192
    %221 = vmatprep.subr.mxu0 0.0
    %222 = vmatpush1.msra.mxu0 %v191
    %223 = vmatprep.subr.mxu0 0.0
    %224 = vmatpush1.msra.mxu0 %v190
    %225 = vmatprep.subr.mxu0 0.0
    %226 = vmatpush1.msra.mxu0 %v189
    %227 = vmatprep.subr.mxu0 0.0
    %228 = vmatpush1.msra.mxu0 %v188
    %229 = vmatprep.subr.mxu0 0.0
    %230 = vmatpush1.msra.mxu0 %v187
    %231 = vmatprep.subr.mxu0 0.0
    %232 = vmatpush1.msra.mxu0 %v186
    %233 = vmatprep.subr.mxu0 0.0
    %234 = vmatpush1.msra.mxu0 %v185
    %235 = vmatprep.subr.mxu0 0.0
    %236 = vmatpush1.msra.mxu0 %v184
    %237 = vmatprep.subr.mxu0 0.0
    %238 = vmatpush1.msra.mxu0 %v183
    %239 = vmatprep.subr.mxu0 0.0
    %240 = vmatpush1.msra.mxu0 %v182
    %241 = vmatprep.subr.mxu0 0.0
    %242 = vmatpush1.msra.mxu0 %v181
    %243 = vmatprep.subr.mxu0 0.0
    %244 = vmatpush1.msra.mxu0 %v180
    %245 = vmatprep.subr.mxu0 0.0
    %246 = vmatpush1.msra.mxu0 %v179
    %247 = vmatprep.subr.mxu0 0.0
    %248 = vmatpush1.msra.mxu0 %v178
    %249 = vmatprep.subr.mxu0 0.0
    %250 = vmatpush2.msra.mxu0 %v209
    %251 = vmatprep.subr.mxu0 0.0
    %252 = vmatpush2.msra.mxu0 %v208
    %253 = vmatprep.subr.mxu0 0.0
    %254 = vmatpush2.msra.mxu0 %v207
    %255 = vmatprep.subr.mxu0 0.0
    %256 = vmatpush2.msra.mxu0 %v206
    %257 = vmatprep.subr.mxu0 0.0
    %258 = vmatpush2.msra.mxu0 %v205
    %259 = vmatprep.subr.mxu0 0.0
    %260 = vmatpush2.msra.mxu0 %v204
    %261 = vmatprep.subr.mxu0 0.0
    %262 = vmatpush2.msra.mxu0 %v203
    %263 = vmatprep.subr.mxu0 0.0
    %264 = vmatpush2.msra.mxu0 %v202
    %265 = vmatprep.subr.mxu0 0.0
    %266 = vmatpush2.msra.mxu0 %v201
    %267 = vmatprep.subr.mxu0 0.0
    %268 = vmatpush2.msra.mxu0 %v200
    %269 = vmatprep.subr.mxu0 0.0
    %270 = vmatpush2.msra.mxu0 %v199
    %271 = vmatprep.subr.mxu0 0.0
    %272 = vmatpush2.msra.mxu0 %v198
    %273 = vmatprep.subr.mxu0 0.0
    %274 = vmatpush2.msra.mxu0 %v197
    %275 = vmatprep.subr.mxu0 0.0
    %276 = vmatpush2.msra.mxu0 %v196
    %277 = vmatprep.subr.mxu0 0.0
    %278 = vmatpush2.msra.mxu0 %v195
    %279 = vmatprep.subr.mxu0 0.0
    %280 = vmatpush2.msra.mxu0 %v194
    %281 = vmatprep.mubr.f32.mxu0 %v177
    %282 = vmatmul.mubr.f32.gmra.mxu0 %v176
    %v283 = vpop.f32.mrf.mxu0
    %v284 = vadd.f32 %v215, %v283
    %v285 = vpop.f32.mrf.mxu0
    %286 = vdwg.mxu0
    %v287 = vmax.f32 %v284, 0.0
    %288 = vst [vmem:[#allocation8] sm:$0xff] %v287
    // Predicated region
    $region34: #{tpu_custom_call.1} parent=1 // pred_check
      _
    $region35: #{tpu_custom_call.1} parent=1 // pred_check_branch
      %290 = sbr.rel (0) target = $region37
    $region36: #{tpu_custom_call.1} parent=1 // pred_region
      %s292 = ssub.s32 128, 128
      %293 = vsyncadd [#allocation4], %s292
      %s295 = sshll.u32 [#allocation8], 4
      %s296 = int_to_ptr.vmem [resolvable:$true] %s295
      %298 = dma.vmem_to_hbm [thread:$0]  %s296, 128, %s5, [#allocation4]
    $region37: #{tpu_custom_call.1} parent=1 // pred_fallthru
      _
    // Predicated region
    $region38: #{tpu_custom_call.1} parent=1 // pred_check
      _
    $region39: #{tpu_custom_call.1} parent=1 // pred_check_branch
      %300 = sbr.rel (0) target = $region41
    $region40: #{tpu_custom_call.1} parent=1 // pred_region
      %301 = dma.done [#allocation4], 128
    $region41: #{tpu_custom_call.1} parent=1 // pred_fallthru
      _
    %302 = vsyncpa [#allocation3], 1
    %303 = vsyncpa [#allocation6], 1
    %304 = vsyncpa [#allocation4], 1

</llo_original>
